<compile_context>
chip_gen: v7x
topology: tpu7x:2x2x1
jax: 0.10.0
libtpu: 0.0.40
codegen_flags: <defaults>
</compile_context>

<pallas_src>
import jax
import jax.numpy as jnp
from jax.experimental import pallas as pl
from jax.experimental.pallas import tpu as pltpu


def add_emb_kernel(emb_ref, x_ref, o_ref):
    # emb_ref : (1,  Nt)  VMEM-resident embedding chunk (row-broadcast add)
    # x_ref   : (Bt, Nt)  one tile of batch rows
    # o_ref   : (Bt, Nt)
    o_ref[...] = x_ref[...] + emb_ref[...]


def _sublane_pack(dtype):
    # Rows per packed vreg sublane group: 8 for f32, 16 for bf16, 32 for int8/fp8.
    itemsize = jnp.dtype(dtype).itemsize
    return max(8, 32 // max(itemsize, 1))


def _vmem_budget_cap():
    # Generation-aware cap: use at most 3/4 of physical VMEM, never above 96 MiB.
    try:
        phys = int(pltpu.get_tpu_info().vmem_capacity_bytes)
    except Exception:
        phys = 64 << 20  # conservative fallback (v7x per-TC VMEM)
    return int(min((phys * 3) // 4, 96 << 20))


def _choose_tiles(B, N, itemsize, sub, target_tile_bytes=8 << 20):
    """Pick (Bt, Nt): ~8 MiB tiles, lane-dense, dtype-aware sublane rounding."""
    # Lane tiling of the flattened row when even `sub` rows at full width would
    # exceed the tile target (keeps VMEM bounded for very wide rows).
    if N % 128 == 0 and sub * N * itemsize > target_tile_bytes:
        nt = (target_tile_bytes // (sub * itemsize)) // 128 * 128
        Nt = int(max(128, min(nt, N)))
    else:
        Nt = N

    row_bytes = Nt * itemsize
    if B <= sub:
        Bt = B  # full-dim block (tiny batch)
    else:
        bt = (target_tile_bytes // row_bytes) // sub * sub
        Bt = int(max(sub, min(bt, B)))
        # Megacore (v7x, 2 TCs): guarantee >= 2 grid steps when batch permits.
        if pl.cdiv(B, Bt) * pl.cdiv(N, Nt) == 1 and B >= 2 * sub:
            half = (B + 1) // 2
            Bt = int(min(B, ((half + sub - 1) // sub) * sub))
    return Bt, Nt


def fourier_spectral_embedding(x, W):
    """x: (B, S, E), W: (S, E//2) -> x + [sin(pos*W), cos(pos*W)] broadcast over B."""
    B, S, E = x.shape
    assert W.shape == (S, E // 2), (W.shape, (S, E // 2))
    N = S * E

    # Loop-invariant embedding, computed once in the wrapper (tiny: S*E elems).
    pos = jnp.arange(S, dtype=jnp.float32)[:, None]                   # (S, 1)
    pw = pos * W.astype(jnp.float32)                                  # (S, E//2)
    emb = jnp.concatenate([jnp.sin(pw), jnp.cos(pw)], axis=-1)        # (S, E) f32
    # NOTE: cast matches x.dtype (identical for f32); for bf16 inputs PyTorch
    # would promote the add to f32 — intentional, documented precision choice.
    emb_flat = emb.astype(x.dtype).reshape(1, N)                      # (1, S*E)

    x_flat = x.reshape(B, N)                                          # lane-dense layout

    itemsize = jnp.dtype(x.dtype).itemsize
    sub = _sublane_pack(x.dtype)
    Bt, Nt = _choose_tiles(B, N, itemsize, sub)
    grid = (pl.cdiv(B, Bt), pl.cdiv(N, Nt))

    # VMEM plan: double-buffered x-in + out tiles, double-buffered emb chunk,
    # plus headroom; clamped below the per-generation budget cap.
    tile_bytes = Bt * Nt * itemsize
    emb_bytes = Nt * itemsize
    vmem_needed = 4 * tile_bytes + 2 * emb_bytes + (2 << 20)
    vmem_limit = int(min(max(vmem_needed, 16 << 20), _vmem_budget_cap()))

    out_flat = pl.pallas_call(
        add_emb_kernel,
        out_shape=jax.ShapeDtypeStruct((B, N), x.dtype),
        grid_spec=pltpu.PrefetchScalarGridSpec(
            num_scalar_prefetch=0,
            grid=grid,
            in_specs=[
                # emb: constant along batch tiles -> fetched once per lane chunk,
                # stays VMEM-resident across all batch steps.
                pl.BlockSpec((1, Nt), lambda i, j: (0, j)),
                # x: one (Bt, Nt) tile per grid step.
                pl.BlockSpec((Bt, Nt), lambda i, j: (i, j)),
            ],
            out_specs=pl.BlockSpec((Bt, Nt), lambda i, j: (i, j)),
        ),
        compiler_params=pltpu.CompilerParams(
            dimension_semantics=("parallel", "parallel"),
            vmem_limit_bytes=vmem_limit,
        ),
    )(emb_flat, x_flat)

    return out_flat.reshape(B, S, E)


if __name__ == "__main__":
    # Small shapes consistent with the forward's broadcasting: x.shape[1] == num_bands.
    num_bands = 8      # S
    embed_dim = 32     # E  (S*E = 256, multiple of 128 -> lane-dense stores)
    scale = 10.0
    batch = 2

    key = jax.random.PRNGKey(0)
    k_w, k_x = jax.random.split(key)

    # Parameter: torch.randn(num_bands, embed_dim // 2) * scale
    W = jax.random.normal(k_w, (num_bands, embed_dim // 2), dtype=jnp.float32) * scale
    # Input x: (B, S, E)
    x = jax.random.normal(k_x, (batch, num_bands, embed_dim), dtype=jnp.float32)

    out = fourier_spectral_embedding(x, W)
    out = jax.block_until_ready(out)

    # Pure-JAX reference.
    pos = jnp.arange(num_bands, dtype=jnp.float32)[:, None]                  # (S, 1)
    emb_ref = jnp.concatenate([jnp.sin(pos * W), jnp.cos(pos * W)], axis=-1) # (S, E)
    ref = x + emb_ref[None, :, :]

    assert out.shape == x.shape and out.dtype == x.dtype
    assert jnp.allclose(out, ref, atol=1e-5, rtol=1e-5), "mismatch vs reference"

    print("KERNEL_OK")
</pallas_src>

<mosaic_0001>
module attributes {stable_mosaic.version = 11 : i64} {
  func.func @add_emb_kernel(%arg0: i32, %arg1: i32, %arg2: memref<1x256xf32, #tpu.memory_space<vmem>>, %arg3: memref<2x256xf32, #tpu.memory_space<vmem>>, %arg4: memref<2x256xf32, #tpu.memory_space<vmem>>) attributes {dimension_semantics = [#tpu.dimension_semantics<parallel>, #tpu.dimension_semantics<parallel>], iteration_bounds = array<i64: 1, 1>, scalar_prefetch = 0 : i64, scratch_operands = 0 : i64, tpu.core_type = #tpu.core_type<tc>, window_params = [{transform_indices = @transform_0, window_bounds = array<i64: 1, 256>}, {transform_indices = @transform_1, window_bounds = array<i64: 2, 256>}, {transform_indices = @transform_2, window_bounds = array<i64: 2, 256>}]} {
    %c0 = arith.constant 0 : index
    %c0_0 = arith.constant 0 : index
    %0 = vector.load %arg3[%c0, %c0_0] : memref<2x256xf32, #tpu.memory_space<vmem>>, vector<2x256xf32>
    %c0_1 = arith.constant 0 : index
    %c0_2 = arith.constant 0 : index
    %1 = vector.load %arg2[%c0_1, %c0_2] : memref<1x256xf32, #tpu.memory_space<vmem>>, vector<1x256xf32>
    %2 = vector.broadcast %1 : vector<1x256xf32> to vector<2x256xf32>
    %3 = arith.addf %0, %2 : vector<2x256xf32>
    %c0_3 = arith.constant 0 : index
    %c0_4 = arith.constant 0 : index
    %4 = vector.load %arg4[%c0_3, %c0_4] : memref<2x256xf32, #tpu.memory_space<vmem>>, vector<2x256xf32>
    tpu.vector_store %arg4[%c0_3, %c0_4], %3 {strides = array<i32>} : memref<2x256xf32, #tpu.memory_space<vmem>>, vector<2x256xf32>,
    return
  }
  func.func @transform_0(%arg0: i32, %arg1: i32) -> (i32, i32) {
    %c0_i32 = arith.constant 0 : i32
    %c0_i32_0 = arith.constant 0 : i32
    return %c0_i32, %arg1 : i32, i32
  }
  func.func @transform_1(%arg0: i32, %arg1: i32) -> (i32, i32) {
    %c0_i32 = arith.constant 0 : i32
    return %arg0, %arg1 : i32, i32
  }
  func.func @transform_2(%arg0: i32, %arg1: i32) -> (i32, i32) {
    %c0_i32 = arith.constant 0 : i32
    return %arg0, %arg1 : i32, i32
  }
}

</mosaic_0001>

<llo_original>
// kernel: tpu_custom_call.1
$region0: #{tpu_custom_call.1}
  #allocation0 [shape = 'u32[]', space=smem, size = 0x4, offset = 0x4, fixed_abs, tag = 'smem constant byte address 0x4 - core index']
  #allocation1 [shape = 'u32[144,128]{1,0:T(1,128)}', space=vmem, size = 0x12000, scoped, tag = 'internal scratch']
  %s0 = inlined_call_operand.hbm [shape: f32[1,256], index: 0, kind: input, shape index: {}]
  %s1 = inlined_call_operand.hbm [shape: f32[2,256], index: 1, kind: input, shape index: {}]
  %s2 = inlined_call_operand.hbm [shape: f32[2,256], index: 2, kind: output, shape index: {}]
  %s3 = sld [smem:[#allocation0]]
  $region26: #{tpu_custom_call.1} parent=0
    _
  %s5 = ssub.s32 1, %s3
  %s6 = scalar_select 0, %s5, %s3
  $region1: #{tpu_custom_call.1} parent=0
    #allocation2 [shape = 'u8[1024]{0}', space=vmem, size = 0x400, scoped, tag = 'input window, operand 0, single buffered']
    #allocation3 [shape = 's32[1]{0}', space=sflag, size = 0x4, scoped, tag = 'scoped memory for tpu_custom_call.1']
    #allocation4 [shape = 's32[1]{0}', space=sflag, size = 0x4, scoped, tag = 'scoped memory for tpu_custom_call.1']
    #allocation5 [shape = 'u8[2048]{0}', space=vmem, size = 0x800, scoped, tag = 'input window, operand 1, single buffered']
    #allocation6 [shape = 's32[1]{0}', space=sflag, size = 0x4, scoped, tag = 'scoped memory for tpu_custom_call.1']
    #allocation7 [shape = 'u8[2048]{0}', space=vmem, size = 0x800, scoped, tag = 'output window, operand 0, single buffered']
    %7 = vsyncpa [#allocation3], 0
    %8 = vsyncpa [#allocation6], 0
    %9 = vsyncpa [#allocation4], 0
    // Predicated region
    $region2: #{tpu_custom_call.1} parent=1 // pred_check
      _
    $region3: #{tpu_custom_call.1} parent=1 // pred_check_branch
      %11 = sbr.rel (0) target = $region5
    $region4: #{tpu_custom_call.1} parent=1 // pred_region
      %s13 = ssub.s32 32, 32
      %14 = vsyncadd [#allocation3], %s13
      %s16 = sshll.u32 [#allocation2], 4
      %s17 = int_to_ptr.vmem [resolvable:$true] %s16
      %19 = dma.hbm_to_vmem [thread:$0]  %s0, 32, %s17, [#allocation3]
    $region5: #{tpu_custom_call.1} parent=1 // pred_fallthru
      _
    // Predicated region
    $region6: #{tpu_custom_call.1} parent=1 // pred_check
      _
    $region7: #{tpu_custom_call.1} parent=1 // pred_check_branch
      %21 = sbr.rel (0) target = $region9
    $region8: #{tpu_custom_call.1} parent=1 // pred_region
      %s23 = ssub.s32 64, 64
      %24 = vsyncadd [#allocation6], %s23
      %s26 = sshll.u32 [#allocation5], 4
      %s27 = int_to_ptr.vmem [resolvable:$true] %s26
      %29 = dma.hbm_to_vmem [thread:$0]  %s1, 64, %s27, [#allocation6]
    $region9: #{tpu_custom_call.1} parent=1 // pred_fallthru
      _
    // Predicated region
    $region10: #{tpu_custom_call.1} parent=1 // pred_check
      _
    $region11: #{tpu_custom_call.1} parent=1 // pred_check_branch
      %31 = sbr.rel (0) target = $region13
    $region12: #{tpu_custom_call.1} parent=1 // pred_region
      %32 = dma.done [#allocation3], 32
    $region13: #{tpu_custom_call.1} parent=1 // pred_fallthru
      _
    // Predicated region
    $region14: #{tpu_custom_call.1} parent=1 // pred_check
      _
    $region15: #{tpu_custom_call.1} parent=1 // pred_check_branch
      %34 = sbr.rel (0) target = $region17
    $region16: #{tpu_custom_call.1} parent=1 // pred_region
      %35 = dma.done [#allocation6], 64
    $region17: #{tpu_custom_call.1} parent=1 // pred_fallthru
      _
    %v36 = vld [vmem:[#allocation5] sm:$0xf]
    %v37 = vld [vmem:[#allocation2] sm:$0x3]
    %v39 = vlaneseq
    %v40 = vshrl.u32 %v39, 7
    %v41 = vsub.s32 0, %v40
    %v42 = vrot.slane %v37, %v41
    %v43 = vlaneseq
    %v44 = vshrl.u32 %v43, 7
    %v45 = vsub.s32 1, %v44
    %v46 = vrot.slane %v37, %v45
    %v47 = vcombine.low %v42, %v46
    %v49 = vunpack.c.l.s4 1983009808
    %v50 = vunpack.c.0.s8 %v49
    %v51 = vlaneseq
    %v52 = vshrl.u32 %v51, 7
    %v53 = vsub.s32 %v50, %v52
    %v54 = vrot.slane %v47, %v53
    %v56 = vadd.f32 %v36, %v54
    %57 = vst [vmem:[#allocation7] sm:$0xf] %v56
    // Predicated region
    $region18: #{tpu_custom_call.1} parent=1 // pred_check
      _
    $region19: #{tpu_custom_call.1} parent=1 // pred_check_branch
      %59 = sbr.rel (0) target = $region21
    $region20: #{tpu_custom_call.1} parent=1 // pred_region
      %s61 = ssub.s32 64, 64
      %62 = vsyncadd [#allocation4], %s61
      %s64 = sshll.u32 [#allocation7], 4
      %s65 = int_to_ptr.vmem [resolvable:$true] %s64
      %67 = dma.vmem_to_hbm [thread:$0]  %s65, 64, %s2, [#allocation4]
    $region21: #{tpu_custom_call.1} parent=1 // pred_fallthru
      _
    // Predicated region
    $region22: #{tpu_custom_call.1} parent=1 // pred_check
      _
    $region23: #{tpu_custom_call.1} parent=1 // pred_check_branch
      %69 = sbr.rel (0) target = $region25
    $region24: #{tpu_custom_call.1} parent=1 // pred_region
      %70 = dma.done [#allocation4], 64
    $region25: #{tpu_custom_call.1} parent=1 // pred_fallthru
      _
    %71 = vsyncpa [#allocation3], 1
    %72 = vsyncpa [#allocation6], 1
    %73 = vsyncpa [#allocation4], 1

</llo_original>
